<compile_context>
chip_gen: v5e
topology: v5e:2x2
jax: 0.10.0
libtpu: 0.0.40
codegen_flags: <defaults>
</compile_context>

<pallas_src>
import functools
import math

import jax
import jax.numpy as jnp
from jax.experimental import pallas as pl
from jax.experimental.pallas import tpu as pltpu

_LANE = 128
_HOFF = 64   # lane offset of the per-head SOURCE scores in the score matmul


def _round_up(n, m):
    return ((n + m - 1) // m) * m


def _pick_tile(n, candidates):
    for c in candidates:
        if c <= n and n % c == 0:
            return c
    return n


# ---------------------------------------------------------------------------
# Kernel A: projection + per-head dst AND src scores (tiled over node rows)
# ---------------------------------------------------------------------------
def _gat_project_kernel(x_ref, w_ref, aall_ref, xh_ref, s_ref):
    x = x_ref[...].astype(jnp.bfloat16)                        # (TP, F_in)
    xh = jnp.dot(x, w_ref[...], preferred_element_type=jnp.float32)
    xh_bf = xh.astype(jnp.bfloat16)                            # (TP, HC_pad)
    xh_ref[...] = xh_bf
    # s[n, h]        = <xh[n, h*C:(h+1)*C], att_dst[h]>   (lanes [0, heads))
    # s[n, 64 + h]   = <xh[n, h*C:(h+1)*C], att_src[h]>   (lanes [64, 64+heads))
    s_ref[...] = jnp.dot(xh_bf, aall_ref[...],
                         preferred_element_type=jnp.float32)   # (TP, 128)


# ---------------------------------------------------------------------------
# Kernel B: flash-style masked softmax + aggregation
#   grid = (dst tiles ["parallel"], source tiles ["arbitrary"])
# ---------------------------------------------------------------------------
def _gat_attend_kernel(s_ref, ssrc_ref, adj_ref, xh_ref, out_ref,
                       m_sc, l_sc, acc_sc, *, heads, out_ch, concat,
                       apply_relu, apply_log_softmax, out_dim, neg_slope):
    src = pl.program_id(1)
    n_src = pl.num_programs(1)

    @pl.when(src == 0)
    def _():
        m_sc[...] = jnp.full(m_sc.shape, -jnp.inf, m_sc.dtype)
        l_sc[...] = jnp.zeros(l_sc.shape, l_sc.dtype)
        acc_sc[...] = jnp.zeros(acc_sc.shape, acc_sc.dtype)

    sdst = s_ref[...]                      # (TD, 128) f32 (dst scores, lane h)
    ssrc = ssrc_ref[...]                   # (8, ST)  f32 (src scores, row h)
    xh = xh_ref[...]                       # (ST, HC_pad) bf16
    edge = adj_ref[...] != 0               # (TD, ST) bool, hoisted out of head loop
    slope = jnp.float32(neg_slope)
    neg_big = jnp.float32(-1e30)

    for h in range(heads):
        e = sdst[:, h:h + 1] + ssrc[h:h + 1, :]          # (TD, ST)
        e = jnp.maximum(e, slope * e)                    # LeakyReLU(0.2)
        e = jnp.where(edge, e, neg_big)                  # mask non-edges
        m_old = m_sc[:, h:h + 1]
        m_new = jnp.maximum(m_old, jnp.max(e, axis=1, keepdims=True))
        corr = jnp.exp(m_old - m_new)                    # online-softmax rescale
        p = jnp.exp(e - m_new)
        l_sc[:, h:h + 1] = corr * l_sc[:, h:h + 1] + jnp.sum(p, axis=1,
                                                             keepdims=True)
        m_sc[:, h:h + 1] = m_new
        # F.dropout(alpha, p=0.6, training=False) -> identity (eval mode)
        p_bf = p.astype(jnp.bfloat16)
        if heads == 1:
            # Fast path (the only shape-consistent config): lane-dense 128-wide
            # aggregation (padded lanes of xh are zero and stay zero).
            pv = jnp.dot(p_bf, xh, preferred_element_type=jnp.float32)
            acc_sc[...] = corr * acc_sc[...] + pv
        else:
            c0, c1 = h * out_ch, (h + 1) * out_ch
            pv = jnp.dot(p_bf, xh[:, c0:c1], preferred_element_type=jnp.float32)
            acc_sc[:, c0:c1] = corr * acc_sc[:, c0:c1] + pv

    @pl.when(src == n_src - 1)
    def _():
        td, opad = out_ref.shape
        if heads == 1:
            inv = pl.reciprocal(l_sc[:, 0:1], approx=not apply_log_softmax)
            out = acc_sc[...] * inv
        else:
            # heads>1 is never shape-consistent in the reference module;
            # kept generic but untested.
            pieces = []
            for h in range(heads):
                inv = pl.reciprocal(l_sc[:, h:h + 1],
                                    approx=not apply_log_softmax)
                pieces.append(acc_sc[:, h * out_ch:(h + 1) * out_ch] * inv)
            if concat:
                out = jnp.concatenate(pieces, axis=1)
            else:
                out = sum(pieces) * jnp.float32(1.0 / heads)
            if out.shape[1] < opad:
                out = jnp.concatenate(
                    [out, jnp.zeros((td, opad - out.shape[1]), jnp.float32)],
                    axis=1)

        if apply_relu:                 # inter-layer F.relu (dropout identity)
            out = jnp.maximum(out, 0.0)

        if apply_log_softmax:          # final F.log_softmax over real columns
            col = jax.lax.broadcasted_iota(jnp.int32, (td, opad), 1)
            valid = col < out_dim
            mx = jnp.max(jnp.where(valid, out, neg_big), axis=1, keepdims=True)
            z = out - mx
            denom = jnp.sum(jnp.where(valid, jnp.exp(z), 0.0), axis=1,
                            keepdims=True)
            out = jnp.where(valid, z - jnp.log(denom), 0.0)

        out_ref[...] = out.astype(out_ref.dtype)


# ---------------------------------------------------------------------------
# Wrapper: one fused GATConv layer = projection call + attention call.
# ---------------------------------------------------------------------------
def gat_conv_pallas(x, w, att, adj, *, heads, out_ch, concat,
                    apply_relu, apply_log_softmax, neg_slope=0.2):
    n_pad, x_width = x.shape
    assert n_pad % _LANE == 0
    assert heads <= 8, "score packing assumes heads <= 8"
    f_in, hc = w.shape
    assert hc == heads * out_ch

    # Previous layer's output is lane-padded; extend w with zero rows so the
    # padded (all-zero) input columns contract to nothing.
    if x_width > f_in:
        w = jnp.concatenate(
            [w, jnp.zeros((x_width - f_in, hc), w.dtype)], axis=0)
        f_in = x_width

    hc_pad = _round_up(hc, _LANE)

    # Lane-padded bf16 weight; combined dst/src attention matrix so Kernel A
    # produces both score sets in one MXU matmul.
    w_pad = jnp.zeros((f_in, hc_pad), jnp.bfloat16)
    w_pad = w_pad.at[:, :hc].set(w.astype(jnp.bfloat16))
    a_dst = att[:, :out_ch]                        # multiplies x_i (target)
    a_src = att[:, out_ch:]                        # multiplies x_j (source)
    A_all = jnp.zeros((hc_pad, _LANE), jnp.float32)
    for h in range(heads):
        A_all = A_all.at[h * out_ch:(h + 1) * out_ch, h].set(a_dst[h])
        A_all = A_all.at[h * out_ch:(h + 1) * out_ch, _HOFF + h].set(a_src[h])
    A_all = A_all.astype(jnp.bfloat16)

    # --- Kernel A: projection + scores, large row tiles -----------------------
    tp = _pick_tile(n_pad, (1024, 512, 256, 128))
    xh, s_all = pl.pallas_call(
        _gat_project_kernel,
        out_shape=(jax.ShapeDtypeStruct((n_pad, hc_pad), jnp.bfloat16),
                   jax.ShapeDtypeStruct((n_pad, _LANE), jnp.float32)),
        grid_spec=pltpu.PrefetchScalarGridSpec(
            num_scalar_prefetch=0,
            grid=(n_pad // tp,),
            in_specs=[pl.BlockSpec((tp, f_in), lambda i: (i, 0)),
                      pl.BlockSpec((f_in, hc_pad), lambda i: (0, 0)),
                      pl.BlockSpec((hc_pad, _LANE), lambda i: (0, 0))],
            out_specs=(pl.BlockSpec((tp, hc_pad), lambda i: (i, 0)),
                       pl.BlockSpec((tp, _LANE), lambda i: (i, 0)))),
        compiler_params=pltpu.CompilerParams(
            dimension_semantics=("parallel",)),
    )(x, w_pad, A_all)

    # Source scores transposed once (head-major, nodes on lanes) so Kernel B
    # just adds a (1, S_TILE) row per head -- no per-tile dot_general.
    ssrc_t = jnp.transpose(s_all[:, _HOFF:_HOFF + 8])          # (8, N_pad) f32

    # --- Kernel B: flash-style attention + aggregation ------------------------
    # Small graphs use TD=64 so the "parallel" dst axis has >=2 steps
    # (v7x megacore); source tile bounded so VMEM per step stays small.
    td = 64 if n_pad <= 256 else 128
    st = _pick_tile(n_pad, (2048, 1024, 512, 256, 128))
    out_dtype = jnp.float32 if apply_log_softmax else jnp.bfloat16
    kernel = functools.partial(
        _gat_attend_kernel, heads=heads, out_ch=out_ch, concat=concat,
        apply_relu=apply_relu, apply_log_softmax=apply_log_softmax,
        out_dim=(heads * out_ch if concat else out_ch), neg_slope=neg_slope)
    out = pl.pallas_call(
        kernel,
        out_shape=jax.ShapeDtypeStruct((n_pad, hc_pad), out_dtype),
        grid_spec=pltpu.PrefetchScalarGridSpec(
            num_scalar_prefetch=0,
            grid=(n_pad // td, n_pad // st),
            in_specs=[pl.BlockSpec((td, _LANE), lambda d, s: (d, 0)),    # scores (dst)
                      pl.BlockSpec((8, st), lambda d, s: (0, s)),        # scores (src)
                      pl.BlockSpec((td, st), lambda d, s: (d, s)),       # adj tile
                      pl.BlockSpec((st, hc_pad), lambda d, s: (s, 0))],  # xh tile
            out_specs=pl.BlockSpec((td, hc_pad), lambda d, s: (d, 0)),
            scratch_shapes=[pltpu.VMEM((td, _LANE), jnp.float32),   # running max
                            pltpu.VMEM((td, _LANE), jnp.float32),   # running sum
                            pltpu.VMEM((td, hc_pad), jnp.float32)]),  # accumulator
        compiler_params=pltpu.CompilerParams(
            dimension_semantics=("parallel", "arbitrary")),
    )(s_all, ssrc_t, adj, xh)
    return out


# ---------------------------------------------------------------------------
# Plain-JAX glue: parameter init, adjacency construction, layer stacking.
# ---------------------------------------------------------------------------
def _xavier_uniform(key, shape, fan_in, fan_out):
    limit = math.sqrt(6.0 / (fan_in + fan_out))
    return jax.random.uniform(key, shape, jnp.float32, -limit, limit)


def init_gat_params(key, in_channels, hidden_channels, out_channels,
                    num_layers, num_heads):
    """Replicates GAT.__init__ layer-shape construction."""
    och = hidden_channels // num_heads
    specs = [(in_channels, och, num_heads, True)]
    for _ in range(num_layers - 2):
        specs.append((hidden_channels * num_heads, och, num_heads, True))
    f_och = out_channels // num_heads
    specs.append((hidden_channels * num_heads, f_och, num_heads, False))

    params = []
    for (f_in, oc, h, concat) in specs:
        key, k1, k2 = jax.random.split(key, 3)
        # lin.weight is (h*oc, f_in) in torch; store its transpose for x @ W.
        w = _xavier_uniform(k1, (f_in, h * oc), fan_in=f_in, fan_out=h * oc)
        # att_src_expanded is (1, h, 2*oc); stored as (h, 2*oc).
        att = _xavier_uniform(k2, (h, 2 * oc), fan_in=h * 2 * oc, fan_out=2 * oc)
        params.append(dict(w=w, att=att, heads=h, out_ch=oc, concat=concat))
    return params


def dense_adj_with_self_loops(edge_index, num_nodes_padded):
    # edge_index[0] = source nodes (j), edge_index[1] = target nodes (i).
    # int8 mask (4x smaller DMA than f32); duplicate edges collapse to one.
    src, dst = edge_index[0], edge_index[1]
    adj = jnp.zeros((num_nodes_padded, num_nodes_padded), jnp.int8)
    adj = adj.at[dst, src].set(jnp.int8(1))
    # add_self_loops — also on padded rows so every softmax row is finite.
    diag = jnp.arange(num_nodes_padded)
    adj = adj.at[diag, diag].set(jnp.int8(1))
    return adj


def gat_forward(x, adjs, params):
    num_layers = len(adjs)
    n = x.shape[0]
    n_pad = _round_up(max(n, 1), _LANE)
    x_p = jnp.zeros((n_pad, x.shape[1]), jnp.float32).at[:n, :].set(x)
    out_real_dim = x.shape[1]
    adj_cache = {}   # reuse the dense adjacency when edge_index is shared
    for i, (edge_index, _, size) in enumerate(adjs):
        # x_target = x[:size[1]] is passed in the reference but unused by the
        # GATConv compute path (propagate runs on the full x), so we skip it.
        p = params[i]
        ck = id(edge_index)
        if ck not in adj_cache:
            adj_cache[ck] = dense_adj_with_self_loops(edge_index, n_pad)
        adj = adj_cache[ck]
        last = (i == num_layers - 1)
        x_p = gat_conv_pallas(
            x_p, p["w"], p["att"], adj,
            heads=p["heads"], out_ch=p["out_ch"], concat=p["concat"],
            apply_relu=not last, apply_log_softmax=last)
        out_real_dim = (p["heads"] * p["out_ch"]) if p["concat"] else p["out_ch"]
    return x_p[:n, :out_real_dim].astype(jnp.float32)


if __name__ == "__main__":
    key = jax.random.PRNGKey(0)

    N = 16                        # number of nodes
    in_ch, hidden, out_ch = 8, 32, 8
    num_layers, num_heads = 2, 1  # heads=1: the only consistent config

    kx, kp, ke, ke2 = jax.random.split(key, 4)
    x = jax.random.normal(kx, (N, in_ch), jnp.float32)
    params = init_gat_params(kp, in_ch, hidden, out_ch, num_layers, num_heads)

    # synthetic edge_index (2, E): row 0 = source, row 1 = target
    E = 40
    src = jax.random.randint(ke, (E,), 0, N)
    dst = jax.random.randint(ke2, (E,), 0, N)
    edge_index = jnp.stack([src, dst], axis=0)
    adjs = [(edge_index, None, (N, N)) for _ in range(num_layers)]

    out = gat_forward(x, adjs, params)
    out = jax.block_until_ready(out)

    final_dim = out_ch // num_heads
    assert out.shape == (N, final_dim), out.shape
    assert bool(jnp.all(jnp.isfinite(out)))
    # log_softmax rows must (log-)sum to 1
    assert bool(jnp.allclose(jnp.sum(jnp.exp(out), axis=1), 1.0, atol=1e-4))
    print("KERNEL_OK")
</pallas_src>

<mosaic_0001>
module attributes {stable_mosaic.version = 11 : i64} {
  func.func @_gat_project_kernel(%arg0: i32, %arg1: memref<128x8xf32, #tpu.memory_space<vmem>>, %arg2: memref<8x128xbf16, #tpu.memory_space<vmem>>, %arg3: memref<128x128xbf16, #tpu.memory_space<vmem>>, %arg4: memref<128x128xbf16, #tpu.memory_space<vmem>>, %arg5: memref<128x128xf32, #tpu.memory_space<vmem>>) attributes {dimension_semantics = [#tpu.dimension_semantics<parallel>], iteration_bounds = array<i64: 1>, scalar_prefetch = 0 : i64, scratch_operands = 0 : i64, tpu.core_type = #tpu.core_type<tc>, window_params = [{transform_indices = @transform_0, window_bounds = array<i64: 128, 8>}, {pipeline_mode = #tpu.pipeline_mode<synchronous>, transform_indices = @transform_1, window_bounds = array<i64: 8, 128>}, {pipeline_mode = #tpu.pipeline_mode<synchronous>, transform_indices = @transform_2, window_bounds = array<i64: 128, 128>}, {transform_indices = @transform_3, window_bounds = array<i64: 128, 128>}, {transform_indices = @transform_4, window_bounds = array<i64: 128, 128>}]} {
    %c0 = arith.constant 0 : index
    %c0_0 = arith.constant 0 : index
    %0 = vector.load %arg1[%c0, %c0_0] : memref<128x8xf32, #tpu.memory_space<vmem>>, vector<128x8xf32>
    %1 = arith.truncf %0 : vector<128x8xf32> to vector<128x8xbf16>
    %c0_1 = arith.constant 0 : index
    %c0_2 = arith.constant 0 : index
    %2 = vector.load %arg2[%c0_1, %c0_2] : memref<8x128xbf16, #tpu.memory_space<vmem>>, vector<8x128xbf16>
    %cst = arith.constant dense<0.000000e+00> : vector<128x128xf32>
    %3 = tpu.matmul %1, %2, %cst {dimension_numbers = #tpu.dot_dimension_numbers<[1], [0], [0], [1], [0, 0, 1, 1], [], []>} : vector<128x8xbf16>, vector<8x128xbf16>, vector<128x128xf32> -> vector<128x128xf32>
    %4 = arith.truncf %3 : vector<128x128xf32> to vector<128x128xbf16>
    %c0_3 = arith.constant 0 : index
    %c0_4 = arith.constant 0 : index
    %5 = vector.load %arg4[%c0_3, %c0_4] : memref<128x128xbf16, #tpu.memory_space<vmem>>, vector<128x128xbf16>
    tpu.vector_store %arg4[%c0_3, %c0_4], %4 {strides = array<i32>} : memref<128x128xbf16, #tpu.memory_space<vmem>>, vector<128x128xbf16>,
    %c0_5 = arith.constant 0 : index
    %c0_6 = arith.constant 0 : index
    %6 = vector.load %arg3[%c0_5, %c0_6] : memref<128x128xbf16, #tpu.memory_space<vmem>>, vector<128x128xbf16>
    %cst_7 = arith.constant dense<0.000000e+00> : vector<128x128xf32>
    %7 = tpu.matmul %4, %6, %cst_7 {dimension_numbers = #tpu.dot_dimension_numbers<[1], [0], [0], [1], [0, 0, 1, 1], [], []>} : vector<128x128xbf16>, vector<128x128xbf16>, vector<128x128xf32> -> vector<128x128xf32>
    %c0_8 = arith.constant 0 : index
    %c0_9 = arith.constant 0 : index
    %8 = vector.load %arg5[%c0_8, %c0_9] : memref<128x128xf32, #tpu.memory_space<vmem>>, vector<128x128xf32>
    tpu.vector_store %arg5[%c0_8, %c0_9], %7 {strides = array<i32>} : memref<128x128xf32, #tpu.memory_space<vmem>>, vector<128x128xf32>,
    return
  }
  func.func @transform_0(%arg0: i32) -> (i32, i32) {
    %c0_i32 = arith.constant 0 : i32
    %c0_i32_0 = arith.constant 0 : i32
    return %arg0, %c0_i32 : i32, i32
  }
  func.func @transform_1(%arg0: i32) -> (i32, i32) {
    %c0_i32 = arith.constant 0 : i32
    %c0_i32_0 = arith.constant 0 : i32
    %c0_i32_1 = arith.constant 0 : i32
    return %c0_i32, %c0_i32_0 : i32, i32
  }
  func.func @transform_2(%arg0: i32) -> (i32, i32) {
    %c0_i32 = arith.constant 0 : i32
    %c0_i32_0 = arith.constant 0 : i32
    %c0_i32_1 = arith.constant 0 : i32
    return %c0_i32, %c0_i32_0 : i32, i32
  }
  func.func @transform_3(%arg0: i32) -> (i32, i32) {
    %c0_i32 = arith.constant 0 : i32
    %c0_i32_0 = arith.constant 0 : i32
    return %arg0, %c0_i32 : i32, i32
  }
  func.func @transform_4(%arg0: i32) -> (i32, i32) {
    %c0_i32 = arith.constant 0 : i32
    %c0_i32_0 = arith.constant 0 : i32
    return %arg0, %c0_i32 : i32, i32
  }
}

</mosaic_0001>

<llo_original>
// kernel: tpu_custom_call.1
$region0: #{tpu_custom_call.1}
  #allocation0 [shape = 'u32[]', space=smem, size = 0x4, offset = 0x4, fixed_abs, tag = 'smem constant byte address 0x4 - core index']
  #allocation1 [shape = 'u32[72,128]{1,0:T(1,128)}', space=vmem, size = 0x9000, scoped, tag = 'internal scratch']
  %s0 = inlined_call_operand.vmem [shape: f32[128,8], index: 0, kind: input, shape index: {}]
  %s1 = inlined_call_operand.vmem [shape: bf16[8,128], index: 1, kind: input, shape index: {}]
  %s2 = inlined_call_operand.vmem [shape: bf16[128,128], index: 2, kind: input, shape index: {}]
  %s3 = inlined_call_operand.hbm [shape: bf16[128,128], index: 3, kind: output, shape index: {0}]
  %s4 = inlined_call_operand.hbm [shape: f32[128,128], index: 4, kind: output, shape index: {1}]
  %5 = xla_tuple %s3, %s4
  %s6 = sld [smem:[#allocation0]]
  $region30: #{tpu_custom_call.1} parent=0
    _
  %s8 = ssub.s32 1, %s6
  %s9 = scalar_select 0, %s8, %s6
  $region1: #{tpu_custom_call.1} parent=0
    #allocation2 [shape = 'u8[32768]{0}', space=vmem, size = 0x8000, scoped, tag = 'output window, operand 0, single buffered']
    #allocation3 [shape = 's32[1]{0}', space=sflag, size = 0x4, scoped, tag = 'scoped memory for tpu_custom_call.1']
    #allocation4 [shape = 'u8[65536]{0}', space=vmem, size = 0x10000, scoped, tag = 'output window, operand 1, single buffered']
    #allocation5 [shape = 's32[1]{0}', space=sflag, size = 0x4, scoped, tag = 'scoped memory for tpu_custom_call.1']
    %10 = vsyncpa [#allocation3], 0
    %11 = vsyncpa [#allocation5], 0
    // Predicated region
    $region2: #{tpu_custom_call.1} parent=1 // pred_check
      _
    $region3: #{tpu_custom_call.1} parent=1 // pred_check_branch
      %13 = sbr.rel (0) target = $region5
    $region4: #{tpu_custom_call.1} parent=1 // pred_region
      _
    $region5: #{tpu_custom_call.1} parent=1 // pred_fallthru
      _
    // Predicated region
    $region6: #{tpu_custom_call.1} parent=1 // pred_check
      _
    $region7: #{tpu_custom_call.1} parent=1 // pred_check_branch
      %15 = sbr.rel (0) target = $region9
    $region8: #{tpu_custom_call.1} parent=1 // pred_region
      _
    $region9: #{tpu_custom_call.1} parent=1 // pred_fallthru
      _
    // Predicated region
    $region10: #{tpu_custom_call.1} parent=1 // pred_check
      _
    $region11: #{tpu_custom_call.1} parent=1 // pred_check_branch
      %17 = sbr.rel (0) target = $region13
    $region12: #{tpu_custom_call.1} parent=1 // pred_region
      _
    $region13: #{tpu_custom_call.1} parent=1 // pred_fallthru
      _
    %v19 = vld [vmem:[%s0] sm:$0xff]
    %v20 = vld [vmem:[%s0 + $0x8] sm:$0xff]
    %v21 = vld [vmem:[%s0 + $0x10] sm:$0xff]
    %v22 = vld [vmem:[%s0 + $0x18] sm:$0xff]
    %v23 = vld [vmem:[%s0 + $0x20] sm:$0xff]
    %v24 = vld [vmem:[%s0 + $0x28] sm:$0xff]
    %v25 = vld [vmem:[%s0 + $0x30] sm:$0xff]
    %v26 = vld [vmem:[%s0 + $0x38] sm:$0xff]
    %v27 = vld [vmem:[%s0 + $0x40] sm:$0xff]
    %v28 = vld [vmem:[%s0 + $0x48] sm:$0xff]
    %v29 = vld [vmem:[%s0 + $0x50] sm:$0xff]
    %v30 = vld [vmem:[%s0 + $0x58] sm:$0xff]
    %v31 = vld [vmem:[%s0 + $0x60] sm:$0xff]
    %v32 = vld [vmem:[%s0 + $0x68] sm:$0xff]
    %v33 = vld [vmem:[%s0 + $0x70] sm:$0xff]
    %v34 = vld [vmem:[%s0 + $0x78] sm:$0xff]
    %v35 = vpack.c.bf16 %v20, %v19
    %v36 = vpack.c.bf16 %v22, %v21
    %v37 = vpack.c.bf16 %v24, %v23
    %v38 = vpack.c.bf16 %v26, %v25
    %v39 = vpack.c.bf16 %v28, %v27
    %v40 = vpack.c.bf16 %v30, %v29
    %v41 = vpack.c.bf16 %v32, %v31
    %v42 = vpack.c.bf16 %v34, %v33
    %v43 = vld [vmem:[%s1] sm:$0xf]
    %vm44 = vcmask 64512
    %v46 = vsel %vm44, %v35, 0
    %v49 = vsel %vm44, %v36, 0
    %v52 = vsel %vm44, %v37, 0
    %v55 = vsel %vm44, %v38, 0
    %v58 = vsel %vm44, %v39, 0
    %v61 = vsel %vm44, %v40, 0
    %v64 = vsel %vm44, %v41, 0
    %v67 = vsel %vm44, %v42, 0
    %vm69 = vcmask 1043456
    %v71 = vsel %vm69, %v43, 0
    %73 = vmatpush.bf16.msra.mxu0 0
    %74 = vmatpush.bf16.msra.mxu0 0
    %75 = vmatpush.bf16.msra.mxu0 0
    %76 = vmatpush.bf16.msra.mxu0 0
    %77 = vmatpush.bf16.msra.mxu0 0
    %78 = vmatpush.bf16.msra.mxu0 0
    %79 = vmatpush.bf16.msra.mxu0 0
    %80 = vmatpush.bf16.msra.mxu0 %v71
    %81 = vmatmul.bf16.gmra.mxu0 %v46
    %v82 = vpop.f32.mrf.mxu0
    %v83 = vadd.f32 0.0, %v82
    %v84 = vpop.f32.mrf.mxu0
    %v85 = vadd.f32 0.0, %v84
    %86 = vmatmul.bf16.gmra.mxu0 %v49
    %v87 = vpop.f32.mrf.mxu0
    %v88 = vadd.f32 0.0, %v87
    %v89 = vpop.f32.mrf.mxu0
    %v90 = vadd.f32 0.0, %v89
    %91 = vmatmul.bf16.gmra.mxu0 %v52
    %v92 = vpop.f32.mrf.mxu0
    %v93 = vadd.f32 0.0, %v92
    %v94 = vpop.f32.mrf.mxu0
    %v95 = vadd.f32 0.0, %v94
    %96 = vmatmul.bf16.gmra.mxu0 %v55
    %v97 = vpop.f32.mrf.mxu0
    %v98 = vadd.f32 0.0, %v97
    %v99 = vpop.f32.mrf.mxu0
    %v100 = vadd.f32 0.0, %v99
    %101 = vmatmul.bf16.gmra.mxu0 %v58
    %v102 = vpop.f32.mrf.mxu0
    %v103 = vadd.f32 0.0, %v102
    %v104 = vpop.f32.mrf.mxu0
    %v105 = vadd.f32 0.0, %v104
    %106 = vmatmul.bf16.gmra.mxu0 %v61
    %v107 = vpop.f32.mrf.mxu0
    %v108 = vadd.f32 0.0, %v107
    %v109 = vpop.f32.mrf.mxu0
    %v110 = vadd.f32 0.0, %v109
    %111 = vmatmul.bf16.gmra.mxu0 %v64
    %v112 = vpop.f32.mrf.mxu0
    %v113 = vadd.f32 0.0, %v112
    %v114 = vpop.f32.mrf.mxu0
    %v115 = vadd.f32 0.0, %v114
    %116 = vmatmul.bf16.gmra.mxu0 %v67
    %v117 = vpop.f32.mrf.mxu0
    %v118 = vadd.f32 0.0, %v117
    %v119 = vpop.f32.mrf.mxu0
    %v120 = vadd.f32 0.0, %v119
    %121 = vdwg.mxu0
    %v122 = vpack.c.bf16 %v83, %v83
    %v123 = vpack.c.bf16 %v85, %v85
    %v124 = vpack.c.bf16 %v88, %v88
    %v125 = vpack.c.bf16 %v90, %v90
    %v126 = vpack.c.bf16 %v93, %v93
    %v127 = vpack.c.bf16 %v95, %v95
    %v128 = vpack.c.bf16 %v98, %v98
    %v129 = vpack.c.bf16 %v100, %v100
    %v130 = vpack.c.bf16 %v103, %v103
    %v131 = vpack.c.bf16 %v105, %v105
    %v132 = vpack.c.bf16 %v108, %v108
    %v133 = vpack.c.bf16 %v110, %v110
    %v134 = vpack.c.bf16 %v113, %v113
    %v135 = vpack.c.bf16 %v115, %v115
    %v136 = vpack.c.bf16 %v118, %v118
    %v137 = vpack.c.bf16 %v120, %v120
    %138 = vst [vmem:[#allocation2] sm:$0xf] %v122
    %139 = vst [vmem:[#allocation2 + $0x4] sm:$0xf] %v123
    %140 = vst [vmem:[#allocation2 + $0x8] sm:$0xf] %v124
    %141 = vst [vmem:[#allocation2 + $0xc] sm:$0xf] %v125
    %142 = vst [vmem:[#allocation2 + $0x10] sm:$0xf] %v126
    %143 = vst [vmem:[#allocation2 + $0x14] sm:$0xf] %v127
    %144 = vst [vmem:[#allocation2 + $0x18] sm:$0xf] %v128
    %145 = vst [vmem:[#allocation2 + $0x1c] sm:$0xf] %v129
    %146 = vst [vmem:[#allocation2 + $0x20] sm:$0xf] %v130
    %147 = vst [vmem:[#allocation2 + $0x24] sm:$0xf] %v131
    %148 = vst [vmem:[#allocation2 + $0x28] sm:$0xf] %v132
    %149 = vst [vmem:[#allocation2 + $0x2c] sm:$0xf] %v133
    %150 = vst [vmem:[#allocation2 + $0x30] sm:$0xf] %v134
    %151 = vst [vmem:[#allocation2 + $0x34] sm:$0xf] %v135
    %152 = vst [vmem:[#allocation2 + $0x38] sm:$0xf] %v136
    %153 = vst [vmem:[#allocation2 + $0x3c] sm:$0xf] %v137
    %v154 = vld [vmem:[%s2] sm:$0xf]
    %v155 = vld [vmem:[%s2 + $0x4] sm:$0xf]
    %v156 = vld [vmem:[%s2 + $0x8] sm:$0xf]
    %v157 = vld [vmem:[%s2 + $0xc] sm:$0xf]
    %v158 = vld [vmem:[%s2 + $0x10] sm:$0xf]
    %v159 = vld [vmem:[%s2 + $0x14] sm:$0xf]
    %v160 = vld [vmem:[%s2 + $0x18] sm:$0xf]
    %v161 = vld [vmem:[%s2 + $0x1c] sm:$0xf]
    %v162 = vld [vmem:[%s2 + $0x20] sm:$0xf]
    %v163 = vld [vmem:[%s2 + $0x24] sm:$0xf]
    %v164 = vld [vmem:[%s2 + $0x28] sm:$0xf]
    %v165 = vld [vmem:[%s2 + $0x2c] sm:$0xf]
    %v166 = vld [vmem:[%s2 + $0x30] sm:$0xf]
    %v167 = vld [vmem:[%s2 + $0x34] sm:$0xf]
    %v168 = vld [vmem:[%s2 + $0x38] sm:$0xf]
    %v169 = vld [vmem:[%s2 + $0x3c] sm:$0xf]
    %v186 = vunpack.c.l.b16 %v122
    %v187 = vunpack.c.l.b16 %v123
    %v188 = vunpack.c.l.b16 %v124
    %v189 = vunpack.c.l.b16 %v125
    %v190 = vunpack.c.l.b16 %v126
    %v191 = vunpack.c.l.b16 %v127
    %v192 = vunpack.c.l.b16 %v128
    %v193 = vunpack.c.l.b16 %v129
    %v194 = vunpack.c.l.b16 %v130
    %v195 = vunpack.c.l.b16 %v131
    %v196 = vunpack.c.l.b16 %v132
    %v197 = vunpack.c.l.b16 %v133
    %v198 = vunpack.c.l.b16 %v134
    %v199 = vunpack.c.l.b16 %v135
    %v200 = vunpack.c.l.b16 %v136
    %v201 = vunpack.c.l.b16 %v137
    %v202 = vpack.c.b16 %v187, %v186
    %v203 = vpack.c.b16 %v189, %v188
    %v204 = vpack.c.b16 %v191, %v190
    %v205 = vpack.c.b16 %v193, %v192
    %v206 = vpack.c.b16 %v195, %v194
    %v207 = vpack.c.b16 %v197, %v196
    %v208 = vpack.c.b16 %v199, %v198
    %v209 = vpack.c.b16 %v201, %v200
    %v234 = vunpack.c.l.b16 %v154
    %v235 = vunpack.c.l.b16 %v155
    %v236 = vunpack.c.l.b16 %v156
    %v237 = vunpack.c.l.b16 %v157
    %v238 = vunpack.c.l.b16 %v158
    %v239 = vunpack.c.l.b16 %v159
    %v240 = vunpack.c.l.b16 %v160
    %v241 = vunpack.c.l.b16 %v161
    %v242 = vunpack.c.l.b16 %v162
    %v243 = vunpack.c.l.b16 %v163
    %v244 = vunpack.c.l.b16 %v164
    %v245 = vunpack.c.l.b16 %v165
    %v246 = vunpack.c.l.b16 %v166
    %v247 = vunpack.c.l.b16 %v167
    %v248 = vunpack.c.l.b16 %v168
    %v249 = vunpack.c.l.b16 %v169
    %v250 = vpack.c.b16 %v235, %v234
    %v251 = vpack.c.b16 %v237, %v236
    %v252 = vpack.c.b16 %v239, %v238
    %v253 = vpack.c.b16 %v241, %v240
    %v254 = vpack.c.b16 %v243, %v242
    %v255 = vpack.c.b16 %v245, %v244
    %v256 = vpack.c.b16 %v247, %v246
    %v257 = vpack.c.b16 %v249, %v248
    %266 = vmatpush.bf16.msra.mxu0 %v257
    %267 = vmatpush.bf16.msra.mxu0 %v256
    %268 = vmatpush.bf16.msra.mxu0 %v255
    %269 = vmatpush.bf16.msra.mxu0 %v254
    %270 = vmatpush.bf16.msra.mxu0 %v253
    %271 = vmatpush.bf16.msra.mxu0 %v252
    %272 = vmatpush.bf16.msra.mxu0 %v251
    %273 = vmatpush.bf16.msra.mxu0 %v250
    %274 = vmatmul.bf16.gmra.mxu0 %v202
    %v275 = vpop.f32.mrf.mxu0
    %v276 = vadd.f32 0.0, %v275
    %v277 = vpop.f32.mrf.mxu0
    %v278 = vadd.f32 0.0, %v277
    %279 = vmatmul.bf16.gmra.mxu0 %v203
    %v280 = vpop.f32.mrf.mxu0
    %v281 = vadd.f32 0.0, %v280
    %v282 = vpop.f32.mrf.mxu0
    %v283 = vadd.f32 0.0, %v282
    %284 = vmatmul.bf16.gmra.mxu0 %v204
    %v285 = vpop.f32.mrf.mxu0
    %v286 = vadd.f32 0.0, %v285
    %v287 = vpop.f32.mrf.mxu0
    %v288 = vadd.f32 0.0, %v287
    %289 = vmatmul.bf16.gmra.mxu0 %v205
    %v290 = vpop.f32.mrf.mxu0
    %v291 = vadd.f32 0.0, %v290
    %v292 = vpop.f32.mrf.mxu0
    %v293 = vadd.f32 0.0, %v292
    %294 = vmatmul.bf16.gmra.mxu0 %v206
    %v295 = vpop.f32.mrf.mxu0
    %v296 = vadd.f32 0.0, %v295
    %v297 = vpop.f32.mrf.mxu0
    %v298 = vadd.f32 0.0, %v297
    %299 = vmatmul.bf16.gmra.mxu0 %v207
    %v300 = vpop.f32.mrf.mxu0
    %v301 = vadd.f32 0.0, %v300
    %v302 = vpop.f32.mrf.mxu0
    %v303 = vadd.f32 0.0, %v302
    %304 = vmatmul.bf16.gmra.mxu0 %v208
    %v305 = vpop.f32.mrf.mxu0
    %v306 = vadd.f32 0.0, %v305
    %v307 = vpop.f32.mrf.mxu0
    %v308 = vadd.f32 0.0, %v307
    %309 = vmatmul.bf16.gmra.mxu0 %v209
    %v310 = vpop.f32.mrf.mxu0
    %v311 = vadd.f32 0.0, %v310
    %v312 = vpop.f32.mrf.mxu0
    %v313 = vadd.f32 0.0, %v312
    %314 = vdwg.mxu0
    %315 = vst [vmem:[#allocation4] sm:$0xff] %v276
    %316 = vst [vmem:[#allocation4 + $0x8] sm:$0xff] %v278
    %317 = vst [vmem:[#allocation4 + $0x10] sm:$0xff] %v281
    %318 = vst [vmem:[#allocation4 + $0x18] sm:$0xff] %v283
    %319 = vst [vmem:[#allocation4 + $0x20] sm:$0xff] %v286
    %320 = vst [vmem:[#allocation4 + $0x28] sm:$0xff] %v288
    %321 = vst [vmem:[#allocation4 + $0x30] sm:$0xff] %v291
    %322 = vst [vmem:[#allocation4 + $0x38] sm:$0xff] %v293
    %323 = vst [vmem:[#allocation4 + $0x40] sm:$0xff] %v296
    %324 = vst [vmem:[#allocation4 + $0x48] sm:$0xff] %v298
    %325 = vst [vmem:[#allocation4 + $0x50] sm:$0xff] %v301
    %326 = vst [vmem:[#allocation4 + $0x58] sm:$0xff] %v303
    %327 = vst [vmem:[#allocation4 + $0x60] sm:$0xff] %v306
    %328 = vst [vmem:[#allocation4 + $0x68] sm:$0xff] %v308
    %329 = vst [vmem:[#allocation4 + $0x70] sm:$0xff] %v311
    %330 = vst [vmem:[#allocation4 + $0x78] sm:$0xff] %v313
    // Predicated region
    $region14: #{tpu_custom_call.1} parent=1 // pred_check
      _
    $region15: #{tpu_custom_call.1} parent=1 // pred_check_branch
      %332 = sbr.rel (0) target = $region17
    $region16: #{tpu_custom_call.1} parent=1 // pred_region
      %334 = vsyncadd [#allocation3], 0
      %s335 = sshll.u32 [#allocation2], 4
      %s336 = int_to_ptr.vmem [resolvable:$true] %s335
      %s337 = sshll.u32 %s3, 4
      %s338 = int_to_ptr.hbm [resolvable:$true] %s337
      %343 = dma.vmem_to_hbm [thread:$0]  %s336, 1024, %s338, [#allocation3], 64, 64, 4
    $region17: #{tpu_custom_call.1} parent=1 // pred_fallthru
      _
    // Predicated region
    $region18: #{tpu_custom_call.1} parent=1 // pred_check
      _
    $region19: #{tpu_custom_call.1} parent=1 // pred_check_branch
      %345 = sbr.rel (0) target = $region21
    $region20: #{tpu_custom_call.1} parent=1 // pred_region
      %347 = vsyncadd [#allocation5], 0
      %s348 = sshll.u32 [#allocation4], 4
      %s349 = int_to_ptr.vmem [resolvable:$true] %s348
      %s350 = sshll.u32 %s4, 4
      %s351 = int_to_ptr.hbm [resolvable:$true] %s350
      %356 = dma.vmem_to_hbm [thread:$0]  %s349, 2048, %s351, [#allocation5], 128, 128, 8
    $region21: #{tpu_custom_call.1} parent=1 // pred_fallthru
      _
    // Predicated region
    $region22: #{tpu_custom_call.1} parent=1 // pred_check
      _
    $region23: #{tpu_custom_call.1} parent=1 // pred_check_branch
      %358 = sbr.rel (0) target = $region25
    $region24: #{tpu_custom_call.1} parent=1 // pred_region
      %360 = dma.done [#allocation3], 1024
    $region25: #{tpu_custom_call.1} parent=1 // pred_fallthru
      _
    // Predicated region
    $region26: #{tpu_custom_call.1} parent=1 // pred_check
      _
    $region27: #{tpu_custom_call.1} parent=1 // pred_check_branch
      %362 = sbr.rel (0) target = $region29
    $region28: #{tpu_custom_call.1} parent=1 // pred_region
      %364 = dma.done [#allocation5], 2048
    $region29: #{tpu_custom_call.1} parent=1 // pred_fallthru
      _
    %365 = vsyncpa [#allocation3], 1
    %366 = vsyncpa [#allocation5], 1

</llo_original>
